<compile_context>
chip_gen: v7x
topology: tpu7x:2x2x1
jax: 0.10.0
libtpu: 0.0.40
codegen_flags: <defaults>
</compile_context>

<pallas_src>
import jax
import jax.numpy as jnp
from jax.experimental import pallas as pl
from jax.experimental.pallas import tpu as pltpu

DIM = 16
BN_EPS = 1e-5


def _round_up(x, m):
    return (x + m - 1) // m * m


# ----------------------------------------------------------------------------
# Kernel bodies
# ----------------------------------------------------------------------------
def _partial_stats(vals, blk, n_valid):
    # Mask out padded rows so per-channel sums are exact for the true N.
    rows = (jax.lax.broadcasted_iota(jnp.int32, (blk, 1), 0)
            + pl.program_id(0) * blk)
    v = jnp.where(rows < n_valid, vals, 0.0)
    s = jnp.sum(v, axis=0, keepdims=True)           # (1, C)
    sq = jnp.sum(v * v, axis=0, keepdims=True)      # (1, C)
    return jnp.concatenate([s, sq], axis=0)         # (2, C)


def _make_fwd_kernel(stage, blk, n_valid):
    """stage in {1,2,3}: progressively deeper prefix of the network, emitting BN
    partial stats (and, for stage 3, the fused pre-bn1 activations)."""
    def kernel(p_ref, s_ref, x_ref, *out_refs):
        x = x_ref[...]                               # (blk, 32) = [f_img | f_pt]
        w_big = p_ref[0:32, :]                       # (32, 48) fused weight
        b_big = p_ref[32:33, :]                      # (1, 48)  fused bias
        z = jnp.dot(x, w_big, preferred_element_type=jnp.float32) + b_big
        if stage == 1:                               # stats of all 3 pre-BN slabs at once
            out_refs[0][0] = _partial_stats(z, blk, n_valid)
            return

        t1 = z[:, 0:16]                              # fc3 Linear1 output (pre BN3a)
        u1 = jnp.tanh(t1 * s_ref[0:1, :] + s_ref[1:2, :])           # folded BN3a + tanh
        t2 = (jnp.dot(u1, p_ref[40:56, 0:16], preferred_element_type=jnp.float32)
              + p_ref[56:57, 0:16])                                  # fc3 Linear2
        if stage == 2:
            out_refs[0][0] = _partial_stats(t2, blk, n_valid)
            return

        u2 = jnp.tanh(t2 * s_ref[2:3, :] + s_ref[3:4, :])            # folded BN3b + tanh
        # fc3 final Linear(dim -> 1) as a lane reduction (no width-1 matmul)
        logit = (jnp.sum(u2 * p_ref[56:57, 16:32], axis=-1, keepdims=True)
                 + p_ref[57:58, 0:1])
        att = jax.nn.sigmoid(logit)                                  # (blk, 1)

        img_feat = jnp.maximum(z[:, 16:32] * s_ref[4:5, :] + s_ref[5:6, :], 0.0) * att
        pt_feat = jnp.maximum(z[:, 32:48] * s_ref[6:7, :] + s_ref[7:8, :], 0.0)

        # conv_fuse on cat([point, img]) == split matmul (point half + img half)
        fused = (jnp.dot(pt_feat, p_ref[40:56, 16:32], preferred_element_type=jnp.float32)
                 + jnp.dot(img_feat, p_ref[40:56, 32:48], preferred_element_type=jnp.float32)
                 + p_ref[56:57, 32:48])
        out_refs[0][...] = fused                     # pre-bn1 activations, reused by pass 4
        out_refs[1][0] = _partial_stats(fused, blk, n_valid)
    return kernel


def _finalize_kernel(s_ref, f_ref, out_ref):
    # bn1 folded + ReLU over the stored pre-bn1 activations.
    out_ref[...] = jnp.maximum(f_ref[...] * s_ref[8:9, :] + s_ref[9:10, :],
                               0.0).astype(out_ref.dtype)


# ----------------------------------------------------------------------------
# pallas_call wrappers
# ----------------------------------------------------------------------------
_COMPILER = pltpu.CompilerParams(
    dimension_semantics=("parallel",),               # megacore-split on v7x
    vmem_limit_bytes=32 * 1024 * 1024,
)


def _run_stats_stage(stage, x, p, scales, blk, n_valid):
    n_pad = x.shape[0]
    nb = n_pad // blk
    c = 3 * DIM if stage == 1 else DIM
    stats_shape = jax.ShapeDtypeStruct((nb, 2, c), jnp.float32)
    stats_spec = pl.BlockSpec((1, 2, c), lambda i: (i, 0, 0))
    if stage == 3:
        out_shape = (jax.ShapeDtypeStruct((n_pad, DIM), jnp.float32), stats_shape)
        out_specs = (pl.BlockSpec((blk, DIM), lambda i: (i, 0)), stats_spec)
    else:
        out_shape = stats_shape
        out_specs = stats_spec

    return pl.pallas_call(
        _make_fwd_kernel(stage, blk, n_valid),
        out_shape=out_shape,
        grid=(nb,),
        in_specs=[
            pl.BlockSpec((64, 48), lambda i: (0, 0)),   # packed static params
            pl.BlockSpec((16, 16), lambda i: (0, 0)),   # folded BN scale/bias rows
            pl.BlockSpec((blk, 32), lambda i: (i, 0)),  # [f_img | f_pt] block
        ],
        out_specs=out_specs,
        compiler_params=_COMPILER,
    )(p, scales, x)


def _run_finalize(fused, scales, blk):
    n_pad = fused.shape[0]
    nb = n_pad // blk
    return pl.pallas_call(
        _finalize_kernel,
        out_shape=jax.ShapeDtypeStruct((n_pad, DIM), jnp.float32),
        grid=(nb,),
        in_specs=[
            pl.BlockSpec((16, 16), lambda i: (0, 0)),
            pl.BlockSpec((blk, DIM), lambda i: (i, 0)),
        ],
        out_specs=pl.BlockSpec((blk, DIM), lambda i: (i, 0)),
        compiler_params=_COMPILER,
    )(scales, fused)


# ----------------------------------------------------------------------------
# Parameter handling
# ----------------------------------------------------------------------------
def init_params(key, dim=DIM):
    ks = iter(jax.random.split(key, 32))

    def w(*shape):
        return 0.2 * jax.random.normal(next(ks), shape, jnp.float32)

    def v(*shape):
        return 0.1 * jax.random.normal(next(ks), shape, jnp.float32)

    return dict(
        # fc1, fc2 (weights pre-transposed to (in, out))
        w1=w(dim, dim), b1=v(dim), w2=w(dim, dim), b2=v(dim),
        # fc3: Linear, BN, Tanh, Linear, BN, Tanh, Linear(dim -> 1)
        w3a=w(dim, dim), b3a=v(dim), g3a=1.0 + v(dim), be3a=v(dim),
        w3b=w(dim, dim), b3b=v(dim), g3b=1.0 + v(dim), be3b=v(dim),
        w3c=w(dim), b3c=v(),
        # conv1 / conv2 (1x1 conv == matmul) + BN
        wc1=w(dim, dim), bc1=v(dim), gc1=1.0 + v(dim), bec1=v(dim),
        wc2=w(dim, dim), bc2=v(dim), gc2=1.0 + v(dim), bec2=v(dim),
        # conv_fuse (in = 2*dim: rows 0:dim = point half, dim: = img half) + bn1
        wf=w(2 * dim, dim), bf=v(dim), gf=1.0 + v(dim), bef=v(dim),
    )


def pack_params(raw, dim=DIM):
    # Compose fc1/fc2 with fc3's first Linear (exact):  t1 = [f_img|f_pt] @ W_t1 + b_t1
    w_t1 = jnp.concatenate([raw["w1"], raw["w2"]], axis=0) @ raw["w3a"]         # (32, 16)
    b_t1 = (raw["b1"] + raw["b2"]) @ raw["w3a"] + raw["b3a"]                     # (16,)
    zeros = jnp.zeros((dim, dim), jnp.float32)
    w_img = jnp.concatenate([raw["wc1"], zeros], axis=0)                         # conv1: f_img only
    w_pt = jnp.concatenate([zeros, raw["wc2"]], axis=0)                          # conv2: f_pt only
    w_big = jnp.concatenate([w_t1, w_img, w_pt], axis=1)                         # (32, 48)
    b_big = jnp.concatenate([b_t1, raw["bc1"], raw["bc2"]])                      # (48,)

    p = jnp.zeros((64, 48), jnp.float32)
    p = p.at[0:32, :].set(w_big)
    p = p.at[32, :].set(b_big)
    p = p.at[40:56, 0:16].set(raw["w3b"])
    p = p.at[40:56, 16:32].set(raw["wf"][:dim])       # conv_fuse point half
    p = p.at[40:56, 32:48].set(raw["wf"][dim:])       # conv_fuse img half
    p = p.at[56, 0:16].set(raw["b3b"])
    p = p.at[56, 16:32].set(raw["w3c"])
    p = p.at[56, 32:48].set(raw["bf"])
    p = p.at[57, :].set(raw["b3c"])
    packed = {"P": p}
    for k in ("g3a", "be3a", "g3b", "be3b", "gc1", "bec1", "gc2", "bec2", "gf", "bef"):
        packed[k] = raw[k]
    return packed


def _fold_bn(stats, inv_n, gamma, beta):
    # stats: (num_blocks, 2, C) partial [sum, sum_sq]; BN train mode (biased var).
    s = jnp.sum(stats, axis=0)
    mu = s[0] * inv_n
    var = s[1] * inv_n - mu * mu
    scale = gamma * jax.lax.rsqrt(var + BN_EPS)
    bias = beta - mu * scale
    return scale, bias


# ----------------------------------------------------------------------------
# Public forward
# ----------------------------------------------------------------------------
def attention_fusion_add(f_img, f_pt, packed, *, block_n=1024):
    n, dim = f_img.shape
    assert dim == DIM
    x = jnp.concatenate([f_img, f_pt], axis=1).astype(jnp.float32)   # (n, 32), single DMA slab
    blk = min(block_n, _round_up(n, 8))
    n_pad = _round_up(n, blk)
    if n_pad != n:
        x = jnp.pad(x, ((0, n_pad - n), (0, 0)))

    p = packed["P"]
    scales = jnp.zeros((16, DIM), jnp.float32)
    inv_n = 1.0 / n

    # pass 1: BN stats for fc3-BN1, conv1-BN, conv2-BN (all from one fused matmul)
    st1 = _run_stats_stage(1, x, p, scales, blk, n)
    sa, sb = _fold_bn(st1[:, :, 0:16], inv_n, packed["g3a"], packed["be3a"])
    scales = scales.at[0].set(sa).at[1].set(sb)
    sa, sb = _fold_bn(st1[:, :, 16:32], inv_n, packed["gc1"], packed["bec1"])
    scales = scales.at[4].set(sa).at[5].set(sb)
    sa, sb = _fold_bn(st1[:, :, 32:48], inv_n, packed["gc2"], packed["bec2"])
    scales = scales.at[6].set(sa).at[7].set(sb)

    # pass 2: BN stats for fc3-BN2
    st2 = _run_stats_stage(2, x, p, scales, blk, n)
    sa, sb = _fold_bn(st2, inv_n, packed["g3b"], packed["be3b"])
    scales = scales.at[2].set(sa).at[3].set(sb)

    # pass 3: BN stats for bn1 + stash the fused pre-bn1 activations
    fused, st3 = _run_stats_stage(3, x, p, scales, blk, n)
    sa, sb = _fold_bn(st3, inv_n, packed["gf"], packed["bef"])
    scales = scales.at[8].set(sa).at[9].set(sb)

    # pass 4: trivial folded-bn1 + ReLU over the stored activations
    out = _run_finalize(fused, scales, blk)
    return out[:n]


# ----------------------------------------------------------------------------
# Pure-JAX reference (faithful to the PyTorch module, training-mode BN)
# ----------------------------------------------------------------------------
def _reference(f_img, f_pt, raw):
    def bn(x, g, b):
        mu = x.mean(0, keepdims=True)
        var = ((x - mu) ** 2).mean(0, keepdims=True)
        return (x - mu) / jnp.sqrt(var + BN_EPS) * g + b

    feat_img = f_img @ raw["w1"] + raw["b1"]
    feat_pt = f_pt @ raw["w2"] + raw["b2"]
    h = feat_img + feat_pt
    h = jnp.tanh(bn(h @ raw["w3a"] + raw["b3a"], raw["g3a"], raw["be3a"]))
    h = jnp.tanh(bn(h @ raw["w3b"] + raw["b3b"], raw["g3b"], raw["be3b"]))
    att = jax.nn.sigmoid(h @ raw["w3c"][:, None] + raw["b3c"])
    img = jnp.maximum(bn(f_img @ raw["wc1"] + raw["bc1"], raw["gc1"], raw["bec1"]), 0.0) * att
    pt = jnp.maximum(bn(f_pt @ raw["wc2"] + raw["bc2"], raw["gc2"], raw["bec2"]), 0.0)
    fused = pt @ raw["wf"][:DIM] + img @ raw["wf"][DIM:] + raw["bf"]
    return jnp.maximum(bn(fused, raw["gf"], raw["bef"]), 0.0)


if __name__ == "__main__":
    key = jax.random.PRNGKey(0)
    k_par, k_img, k_pt = jax.random.split(key, 3)

    N = 512  # number of points (small demo size; block_n=128 exercises the grid)
    f_img = jax.random.normal(k_img, (N, DIM), jnp.float32)
    f_pt = jax.random.normal(k_pt, (N, DIM), jnp.float32)

    raw = init_params(k_par, DIM)
    packed = pack_params(raw, DIM)

    out = attention_fusion_add(f_img, f_pt, packed, block_n=128)
    out = jax.block_until_ready(out)
    assert out.shape == (N, DIM) and out.dtype == jnp.float32

    ref = _reference(f_img, f_pt, raw)
    err = float(jnp.max(jnp.abs(out - ref)))
    assert err < 2e-3, f"max abs err vs reference: {err}"
    print("KERNEL_OK")
</pallas_src>

<mosaic_0001>
module attributes {stable_mosaic.version = 11 : i64} {
  func.func @kernel(%arg0: i32, %arg1: memref<64x48xf32, #tpu.memory_space<vmem>>, %arg2: memref<16x16xf32, #tpu.memory_space<vmem>>, %arg3: memref<128x32xf32, #tpu.memory_space<vmem>>, %arg4: memref<1x2x48xf32, #tpu.memory_space<vmem>>) attributes {dimension_semantics = [#tpu.dimension_semantics<parallel>], iteration_bounds = array<i64: 4>, scalar_prefetch = 0 : i64, scratch_operands = 0 : i64, tpu.core_type = #tpu.core_type<tc>, window_params = [{pipeline_mode = #tpu.pipeline_mode<synchronous>, transform_indices = @transform_0, window_bounds = array<i64: 64, 48>}, {pipeline_mode = #tpu.pipeline_mode<synchronous>, transform_indices = @transform_1, window_bounds = array<i64: 16, 16>}, {transform_indices = @transform_2, window_bounds = array<i64: 128, 32>}, {transform_indices = @transform_3, window_bounds = array<i64: 1, 2, 48>}]} {
    %c0 = arith.constant 0 : index
    %c0_0 = arith.constant 0 : index
    %0 = vector.load %arg3[%c0, %c0_0] : memref<128x32xf32, #tpu.memory_space<vmem>>, vector<128x32xf32>
    %c0_1 = arith.constant 0 : index
    %c0_2 = arith.constant 0 : index
    %1 = vector.load %arg1[%c0_1, %c0_2] : memref<64x48xf32, #tpu.memory_space<vmem>>, vector<32x48xf32>
    %c32 = arith.constant 32 : index
    %c0_3 = arith.constant 0 : index
    %2 = vector.load %arg1[%c32, %c0_3] : memref<64x48xf32, #tpu.memory_space<vmem>>, vector<1x48xf32>
    %cst = arith.constant dense<0.000000e+00> : vector<128x48xf32>
    %3 = tpu.matmul %0, %1, %cst {dimension_numbers = #tpu.dot_dimension_numbers<[1], [0], [0], [1], [0, 0, 1, 1], [], []>} : vector<128x32xf32>, vector<32x48xf32>, vector<128x48xf32> -> vector<128x48xf32>
    %4 = vector.broadcast %2 : vector<1x48xf32> to vector<128x48xf32>
    %5 = arith.addf %3, %4 : vector<128x48xf32>
    %6 = tpu.iota {dimensions = array<i32: 0>} : vector<128x1xi32>
    %c128_i32 = arith.constant 128 : i32
    %7 = arith.muli %arg0, %c128_i32 : i32
    %8 = vector.broadcast %7 : i32 to vector<128x1xi32>
    %9 = arith.addi %6, %8 : vector<128x1xi32>
    %c512_i32 = arith.constant 512 : i32
    %10 = vector.broadcast %c512_i32 : i32 to vector<128x1xi32>
    %11 = arith.cmpi slt, %9, %10 : vector<128x1xi32>
    %cst_4 = arith.constant 0.000000e+00 : f32
    %12 = vector.shape_cast %11 : vector<128x1xi1> to vector<128x1xi1>
    %13 = vector.broadcast %12 : vector<128x1xi1> to vector<128x48xi1>
    %14 = vector.broadcast %cst_4 : f32 to vector<128x48xf32>
    %15 = arith.select %13, %5, %14 : vector<128x48xi1>, vector<128x48xf32>
    %cst_5 = arith.constant dense<0.000000e+00> : vector<48xf32>
    %16 = vector.multi_reduction <add>, %15, %cst_5 [0] : vector<128x48xf32> to vector<48xf32>
    %17 = vector.shape_cast %16 : vector<48xf32> to vector<1x48xf32>
    %18 = arith.mulf %15, %15 : vector<128x48xf32>
    %cst_6 = arith.constant dense<0.000000e+00> : vector<48xf32>
    %19 = vector.multi_reduction <add>, %18, %cst_6 [0] : vector<128x48xf32> to vector<48xf32>
    %20 = vector.shape_cast %19 : vector<48xf32> to vector<1x48xf32>
    %21 = tpu.concatenate %17, %20 in 0 : vector<1x48xf32>, vector<1x48xf32> -> vector<2x48xf32>
    %c0_7 = arith.constant 0 : index
    %c0_8 = arith.constant 0 : index
    %c0_9 = arith.constant 0 : index
    %22 = vector.load %arg4[%c0_7, %c0_8, %c0_9] : memref<1x2x48xf32, #tpu.memory_space<vmem>>, vector<1x2x48xf32>
    %23 = vector.shape_cast %22 : vector<1x2x48xf32> to vector<2x48xf32>
    %24 = vector.shape_cast %21 : vector<2x48xf32> to vector<1x2x48xf32>
    tpu.vector_store %arg4[%c0_7, %c0_8, %c0_9], %24 {strides = array<i32>} : memref<1x2x48xf32, #tpu.memory_space<vmem>>, vector<1x2x48xf32>,
    return
  }
  func.func @transform_0(%arg0: i32) -> (i32, i32) {
    %c0_i32 = arith.constant 0 : i32
    %c0_i32_0 = arith.constant 0 : i32
    %c0_i32_1 = arith.constant 0 : i32
    return %c0_i32, %c0_i32_0 : i32, i32
  }
  func.func @transform_1(%arg0: i32) -> (i32, i32) {
    %c0_i32 = arith.constant 0 : i32
    %c0_i32_0 = arith.constant 0 : i32
    %c0_i32_1 = arith.constant 0 : i32
    return %c0_i32, %c0_i32_0 : i32, i32
  }
  func.func @transform_2(%arg0: i32) -> (i32, i32) {
    %c0_i32 = arith.constant 0 : i32
    %c0_i32_0 = arith.constant 0 : i32
    return %arg0, %c0_i32 : i32, i32
  }
  func.func @transform_3(%arg0: i32) -> (i32, i32, i32) {
    %c0_i32 = arith.constant 0 : i32
    %c0_i32_0 = arith.constant 0 : i32
    %c0_i32_1 = arith.constant 0 : i32
    return %arg0, %c0_i32, %c0_i32_0 : i32, i32, i32
  }
}

</mosaic_0001>

<llo_original>
// kernel: tpu_custom_call.1
$region0: #{tpu_custom_call.1}
  #allocation0 [shape = 'u32[]', space=smem, size = 0x4, offset = 0x4, fixed_abs, tag = 'smem constant byte address 0x4 - core index']
  #allocation1 [shape = 'u32[144,128]{1,0:T(1,128)}', space=vmem, size = 0x12000, scoped, tag = 'internal scratch']
  %s0 = inlined_call_operand.vmem [shape: f32[64,48], index: 0, kind: input, shape index: {}]
  %s1 = inlined_call_operand.vmem [shape: f32[16,16], index: 1, kind: input, shape index: {}]
  %s2 = inlined_call_operand.vmem [shape: f32[512,32], index: 2, kind: input, shape index: {}]
  %s3 = inlined_call_operand.hbm [shape: f32[4,2,48], index: 3, kind: output, shape index: {}]
  %s4 = sld [smem:[#allocation0]]
  $region45: #{tpu_custom_call.1} parent=0
    _
  %s6 = ssub.s32 1, %s4
  %s7 = scalar_select 0, %s6, %s4
  $region1: #{tpu_custom_call.1} parent=0
    #allocation2 [shape = 'u8[2048]{0}', space=vmem, size = 0x800, scoped, tag = 'output window, operand 0']
    #allocation3 [shape = 's32[2]{0}', space=sflag, size = 0x8, scoped, tag = 'scoped memory for tpu_custom_call.1']
    %8 = vsyncpa [#allocation3], 0
    %s9 = scalar_lea.sflag [#allocation3], 1
    %10 = vsyncpa %s9, 0
    loop: start=0, step=1, limit=6
    $region2: #{tpu_custom_call.1} parent=1 // loop_pre_header
      _
    $region3: #{tpu_custom_call.1} parent=1 // loop_header
      %s12 = sphi 0, %s16
      %p13 = scmp.ge.s32.totalorder %s12, 6
      %s20 = sphi 0, %s20
      %s22 = sphi 0, %s20
      %s23 = sphi 0, %s22
      %s37 = sphi 0, %s23
      %s41 = sphi 0, %s41
      %s43 = sphi 0, %s41
      %s44 = sphi 0, %s43
      %s58 = sphi 0, %s44
      %s64 = sphi 0, %s66
      %s67 = sphi 0, %s64
      %s68 = sphi 0, %s67
      %s84 = sphi 0, %s68
      %s90 = sphi 0, %s92
      %s93 = sphi 0, %s90
      %s94 = sphi 0, %s93
      %s110 = sphi 0, %s94
    $region4: #{tpu_custom_call.1} parent=1 // loop_header_branch
      %15 = sbr.rel (%p13) target = $region8
    $region5: #{tpu_custom_call.1} parent=1 // loop_body
      %s17 = ssub.s32 %s12, 1
      %s18 = ssub.s32 %s12, 2
      %s19 = sadd.s32 %s12, 1
      %s21 = sadd.s32 %s20, 1
      %p24 = scmp.eq.s32.totalorder %s12, 3
      %p25 = scmp.ne.s32.totalorder %s20, %s22
      %p26 = scmp.eq.s32.totalorder %s12, 0
      %p27 = por %p25, %p26
      %p28 = scmp.ne.s32.totalorder %s20, %s22
      %p29 = scmp.eq.s32.totalorder %s17, 3
      %p30 = por %p28, %p29
      %p31 = scmp.ne.s32.totalorder %s22, %s23
      %p32 = scmp.eq.s32.totalorder %s17, 0
      %p33 = por %p31, %p32
      %p34 = scmp.ne.s32.totalorder %s22, %s23
      %p35 = scmp.eq.s32.totalorder %s18, 3
      %p36 = por %p34, %p35
      %p38 = scmp.ne.s32.totalorder %s23, %s37
      %p39 = scmp.eq.s32.totalorder %s18, 0
      %p40 = por %p38, %p39
      %s42 = sadd.s32 %s41, 1
      %p45 = scmp.eq.s32.totalorder %s12, 3
      %p46 = scmp.ne.s32.totalorder %s41, %s43
      %p47 = scmp.eq.s32.totalorder %s12, 0
      %p48 = por %p46, %p47
      %p49 = scmp.ne.s32.totalorder %s41, %s43
      %p50 = scmp.eq.s32.totalorder %s17, 3
      %p51 = por %p49, %p50
      %p52 = scmp.ne.s32.totalorder %s43, %s44
      %p53 = scmp.eq.s32.totalorder %s17, 0
      %p54 = por %p52, %p53
      %p55 = scmp.ne.s32.totalorder %s43, %s44
      %p56 = scmp.eq.s32.totalorder %s18, 3
      %p57 = por %p55, %p56
      %p59 = scmp.ne.s32.totalorder %s44, %s58
      %p60 = scmp.eq.s32.totalorder %s18, 0
      %p61 = por %p59, %p60
      %s62 = ssub.s32 %s12, %s19
      %p63 = scmp.eq.s32.totalorder %s62, 0
      %s65 = sadd.s32 %s64, 1
      %s66 = scalar_select %p63, %s64, %s65
      %p69 = pneg %p63
      %p70 = scmp.eq.s32.totalorder %s12, 3
      %p71 = por %p69, %p70
      %p72 = scmp.ne.s32.totalorder %s64, %s67
      %p73 = scmp.eq.s32.totalorder %s12, 0
      %p74 = por %p72, %p73
      %p75 = scmp.ne.s32.totalorder %s64, %s67
      %p76 = scmp.eq.s32.totalorder %s17, 3
      %p77 = por %p75, %p76
      %p78 = scmp.ne.s32.totalorder %s67, %s68
      %p79 = scmp.eq.s32.totalorder %s17, 0
      %p80 = por %p78, %p79
      %p81 = scmp.ne.s32.totalorder %s67, %s68
      %p82 = scmp.eq.s32.totalorder %s18, 3
      %p83 = por %p81, %p82
      %p85 = scmp.ne.s32.totalorder %s68, %s84
      %p86 = scmp.eq.s32.totalorder %s18, 0
      %p87 = por %p85, %p86
      %s88 = ssub.s32 %s12, %s19
      %p89 = scmp.eq.s32.totalorder %s88, 0
      %s91 = sadd.s32 %s90, 1
      %s92 = scalar_select %p89, %s90, %s91
      %p95 = pneg %p89
      %p96 = scmp.eq.s32.totalorder %s12, 3
      %p97 = por %p95, %p96
      %p98 = scmp.ne.s32.totalorder %s90, %s93
      %p99 = scmp.eq.s32.totalorder %s12, 0
      %p100 = por %p98, %p99
      %p101 = scmp.ne.s32.totalorder %s90, %s93
      %p102 = scmp.eq.s32.totalorder %s17, 3
      %p103 = por %p101, %p102
      %p104 = scmp.ne.s32.totalorder %s93, %s94
      %p105 = scmp.eq.s32.totalorder %s17, 0
      %p106 = por %p104, %p105
      %p107 = scmp.ne.s32.totalorder %s93, %s94
      %p108 = scmp.eq.s32.totalorder %s18, 3
      %p109 = por %p107, %p108
      %p111 = scmp.ne.s32.totalorder %s94, %s110
      %p112 = scmp.eq.s32.totalorder %s18, 0
      %p113 = por %p111, %p112
      %p114 = scmp.le.s32.totalorder 1, %s12
      %p115 = scmp.lt.s32.totalorder %s12, 5
      %p116 = pnand %p114, %p115
      %p117 = pneg %p116
      // Predicated region
      $region9: #{tpu_custom_call.1} parent=5 // pred_check
        _
      $region10: #{tpu_custom_call.1} parent=5 // pred_check_branch
        %119 = sbr.rel (%p116) target = $region12
      $region11: #{tpu_custom_call.1} parent=5 // pred_region
        %s120 = ssub.s32 %s12, 1
        // Predicated region
        $region13: #{tpu_custom_call.1} parent=11 // pred_check
          %p121 = pneg %p33
        $region14: #{tpu_custom_call.1} parent=11 // pred_check_branch
          %123 = sbr.rel (%p121) target = $region16
        $region15: #{tpu_custom_call.1} parent=11 // pred_region
          _
        $region16: #{tpu_custom_call.1} parent=11 // pred_fallthru
          _
        // Predicated region
        $region17: #{tpu_custom_call.1} parent=11 // pred_check
          %p124 = pneg %p54
        $region18: #{tpu_custom_call.1} parent=11 // pred_check_branch
          %126 = sbr.rel (%p124) target = $region20
        $region19: #{tpu_custom_call.1} parent=11 // pred_region
          _
        $region20: #{tpu_custom_call.1} parent=11 // pred_fallthru
          _
      $region12: #{tpu_custom_call.1} parent=5 // pred_fallthru
        _
      %p127 = scmp.lt.s32.totalorder %s12, 4
      // Predicated region
      $region21: #{tpu_custom_call.1} parent=5 // pred_check
        %p128 = pneg %p127
      $region22: #{tpu_custom_call.1} parent=5 // pred_check_branch
        %130 = sbr.rel (%p128) target = $region24
      $region23: #{tpu_custom_call.1} parent=5 // pred_region
        // Predicated region
        $region25: #{tpu_custom_call.1} parent=23 // pred_check
          %p131 = pneg %p74
        $region26: #{tpu_custom_call.1} parent=23 // pred_check_branch
          %133 = sbr.rel (%p131) target = $region28
        $region27: #{tpu_custom_call.1} parent=23 // pred_region
          %s134 = smul.u32 16, %s12
          %p135 = scmp.lt.s32.totalorder %s134, 63
          %s136 = scalar_select %p135, %s134, 63
          %s137 = smul.addr %s136, 8
          %s138 = scalar_lea.vmem %s2, %s137
          %s139 = smul.u32 16, %s12
        $region28: #{tpu_custom_call.1} parent=23 // pred_fallthru
          _
      $region24: #{tpu_custom_call.1} parent=5 // pred_fallthru
        _
      %p140 = scmp.le.s32.totalorder 1, %s12
      %p141 = scmp.lt.s32.totalorder %s12, 5
      %p142 = pnand %p140, %p141
      %p143 = pneg %p142
      // Predicated region
      $region29: #{tpu_custom_call.1} parent=5 // pred_check
        _
      $region30: #{tpu_custom_call.1} parent=5 // pred_check_branch
        %145 = sbr.rel (%p142) target = $region32
      $region31: #{tpu_custom_call.1} parent=5 // pred_region
        %s146 = ssub.s32 %s12, 1
        %p147 = pneg %p33
        %p148 = pneg %p30
        %p149 = pneg %p54
        %p150 = pneg %p51
        %s151 = smul.u32 16, %s17
        %p152 = scmp.lt.s32.totalorder %s151, 63
        %s153 = scalar_select %p152, %s151, 63
        %s154 = smul.addr %s153, 8
        %s155 = scalar_lea.vmem %s2, %s154
        %p156 = pneg %p80
        %p157 = pneg %p77
        %p158 = pneg %p106
        %p159 = pneg %p103
        %s160 = sand.u32 %s93, 1
        %s161 = scalar_lea.sflag [#allocation3], %s160
        %s162 = sand.u32 %s93, 1
        %s163 = smul.addr %s162, 2
        %s164 = scalar_lea.vmem [#allocation2], %s163
        %s165 = smul.u32 16, %s17
        %p166 = scmp.lt.s32.totalorder %s165, 63
        %s167 = scalar_select %p166, %s165, 63
        %s168 = smul.addr %s167, 8
        %s169 = scalar_lea.vmem %s2, %s168
        %s170 = smul.u32 16, %s17
        %v171 = vld [vmem:[%s169] sm:$0xff]
        %v172 = vld [vmem:[%s169 + $0x8] sm:$0xff]
        %v173 = vld [vmem:[%s169 + $0x10] sm:$0xff]
        %v174 = vld [vmem:[%s169 + $0x18] sm:$0xff]
        %v175 = vld [vmem:[%s169 + $0x20] sm:$0xff]
        %v176 = vld [vmem:[%s169 + $0x28] sm:$0xff]
        %v177 = vld [vmem:[%s169 + $0x30] sm:$0xff]
        %v178 = vld [vmem:[%s169 + $0x38] sm:$0xff]
        %v179 = vld [vmem:[%s169 + $0x40] sm:$0xff]
        %v180 = vld [vmem:[%s169 + $0x48] sm:$0xff]
        %v181 = vld [vmem:[%s169 + $0x50] sm:$0xff]
        %v182 = vld [vmem:[%s169 + $0x58] sm:$0xff]
        %v183 = vld [vmem:[%s169 + $0x60] sm:$0xff]
        %v184 = vld [vmem:[%s169 + $0x68] sm:$0xff]
        %v185 = vld [vmem:[%s169 + $0x70] sm:$0xff]
        %v186 = vld [vmem:[%s169 + $0x78] sm:$0xff]
        %v187 = vld [vmem:[%s0] sm:$0xff]
        %v188 = vld [vmem:[%s0 + $0x8] sm:$0xff]
        %v189 = vld [vmem:[%s0 + $0x10] sm:$0xff]
        %v190 = vld [vmem:[%s0 + $0x18] sm:$0xff]
        %v191 = vld [vmem:[%s0 + $0x20] sm:$0x1]
        %v192 = vlaneseq
        %v193 = vshrl.u32 %v192, 7
        %v194 = vsub.s32 0, %v193
        %v195 = vrot.slane %v191, %v194
        %vm196 = vcmask 261120
        %v198 = vsel %vm196, %v171, 0
        %v201 = vsel %vm196, %v172, 0
        %v204 = vsel %vm196, %v173, 0
        %v207 = vsel %vm196, %v174, 0
        %v210 = vsel %vm196, %v175, 0
        %v213 = vsel %vm196, %v176, 0
        %v216 = vsel %vm196, %v177, 0
        %v219 = vsel %vm196, %v178, 0
        %v222 = vsel %vm196, %v179, 0
        %v225 = vsel %vm196, %v180, 0
        %v228 = vsel %vm196, %v181, 0
        %v231 = vsel %vm196, %v182, 0
        %v234 = vsel %vm196, %v183, 0
        %v237 = vsel %vm196, %v184, 0
        %v240 = vsel %vm196, %v185, 0
        %v243 = vsel %vm196, %v186, 0
        %245 = vmatprep.subr.mxu0 0.0
        %246 = vmatpush1.msra.mxu0 %v187
        %247 = vmatprep.subr.mxu0 0.0
        %248 = vmatpush1.msra.mxu0 %v188
        %249 = vmatprep.subr.mxu0 0.0
        %250 = vmatpush1.msra.mxu0 %v189
        %251 = vmatprep.subr.mxu0 0.0
        %252 = vmatpush1.msra.mxu0 %v190
        %253 = vmatprep.subr.mxu0 0.0
        %254 = vmatpush1.msra.mxu0 0.0
        %255 = vmatprep.subr.mxu0 0.0
        %256 = vmatpush1.msra.mxu0 0.0
        %257 = vmatprep.subr.mxu0 0.0
        %258 = vmatpush1.msra.mxu0 0.0
        %259 = vmatprep.subr.mxu0 0.0
        %260 = vmatpush1.msra.mxu0 0.0
        %261 = vmatprep.subr.mxu0 0.0
        %262 = vmatpush1.msra.mxu0 0.0
        %263 = vmatprep.subr.mxu0 0.0
        %264 = vmatpush1.msra.mxu0 0.0
        %265 = vmatprep.subr.mxu0 0.0
        %266 = vmatpush1.msra.mxu0 0.0
        %267 = vmatprep.subr.mxu0 0.0
        %268 = vmatpush1.msra.mxu0 0.0
        %269 = vmatprep.subr.mxu0 0.0
        %270 = vmatpush1.msra.mxu0 0.0
        %271 = vmatprep.subr.mxu0 0.0
        %272 = vmatpush1.msra.mxu0 0.0
        %273 = vmatprep.subr.mxu0 0.0
        %274 = vmatpush1.msra.mxu0 0.0
        %275 = vmatprep.subr.mxu0 0.0
        %276 = vmatpush1.msra.mxu0 0.0
        %277 = vmatprep.subr.mxu0 0.0
        %278 = vmatpush1.msra.mxu0 0.0
        %279 = vmatprep.subr.mxu0 0.0
        %280 = vmatpush1.msra.mxu0 0.0
        %281 = vmatprep.subr.mxu0 0.0
        %282 = vmatpush1.msra.mxu0 0.0
        %283 = vmatprep.subr.mxu0 0.0
        %284 = vmatpush1.msra.mxu0 0.0
        %285 = vmatprep.subr.mxu0 0.0
        %286 = vmatpush1.msra.mxu0 0.0
        %287 = vmatprep.subr.mxu0 0.0
        %288 = vmatpush1.msra.mxu0 0.0
        %289 = vmatprep.subr.mxu0 0.0
        %290 = vmatpush1.msra.mxu0 0.0
        %291 = vmatprep.subr.mxu0 0.0
        %292 = vmatpush1.msra.mxu0 0.0
        %293 = vmatprep.subr.mxu0 0.0
        %294 = vmatpush1.msra.mxu0 0.0
        %295 = vmatprep.subr.mxu0 0.0
        %296 = vmatpush1.msra.mxu0 0.0
        %297 = vmatprep.subr.mxu0 0.0
        %298 = vmatpush1.msra.mxu0 0.0
        %299 = vmatprep.subr.mxu0 0.0
        %300 = vmatpush1.msra.mxu0 0.0
        %301 = vmatprep.subr.mxu0 0.0
        %302 = vmatpush1.msra.mxu0 0.0
        %303 = vmatprep.subr.mxu0 0.0
        %304 = vmatpush1.msra.mxu0 0.0
        %305 = vmatprep.subr.mxu0 0.0
        %306 = vmatpush1.msra.mxu0 0.0
        %307 = vmatprep.subr.mxu0 0.0
        %308 = vmatpush1.msra.mxu0 0.0
        %309 = vmatprep.mubr.f32.mxu0 0.0
        %310 = vmatmul.mubr.f32.gmra.mrb[0].mxu0 %v198
        %v311 = vpop.f32.mrb[0].mxu0
        %v312 = vadd.f32 %v195, %v311
        %v313 = vpop.f32.mrb[0].mxu0
        %314 = vmatprep.mubr.f32.mxu0 0.0
        %315 = vmatmul.mubr.f32.gmra.mrb[0].mxu0 %v201
        %v316 = vpop.f32.mrb[0].mxu0
        %v317 = vadd.f32 %v195, %v316
        %v318 = vpop.f32.mrb[0].mxu0
        %319 = vmatprep.mubr.f32.mxu0 0.0
        %320 = vmatmul.mubr.f32.gmra.mrb[0].mxu0 %v204
        %v321 = vpop.f32.mrb[0].mxu0
        %v322 = vadd.f32 %v195, %v321
        %v323 = vpop.f32.mrb[0].mxu0
        %324 = vmatprep.mubr.f32.mxu0 0.0
        %325 = vmatmul.mubr.f32.gmra.mrb[0].mxu0 %v207
        %v326 = vpop.f32.mrb[0].mxu0
        %v327 = vadd.f32 %v195, %v326
        %v328 = vpop.f32.mrb[0].mxu0
        %329 = vmatprep.mubr.f32.mxu0 0.0
        %330 = vmatmul.mubr.f32.gmra.mrb[0].mxu0 %v210
        %v331 = vpop.f32.mrb[0].mxu0
        %v332 = vadd.f32 %v195, %v331
        %v333 = vpop.f32.mrb[0].mxu0
        %334 = vmatprep.mubr.f32.mxu0 0.0
        %335 = vmatmul.mubr.f32.gmra.mrb[0].mxu0 %v213
        %v336 = vpop.f32.mrb[0].mxu0
        %v337 = vadd.f32 %v195, %v336
        %v338 = vpop.f32.mrb[0].mxu0
        %339 = vmatprep.mubr.f32.mxu0 0.0
        %340 = vmatmul.mubr.f32.gmra.mrb[0].mxu0 %v216
        %v341 = vpop.f32.mrb[0].mxu0
        %v342 = vadd.f32 %v195, %v341
        %v343 = vpop.f32.mrb[0].mxu0
        %344 = vmatprep.mubr.f32.mxu0 0.0
        %345 = vmatmul.mubr.f32.gmra.mrb[0].mxu0 %v219
        %v346 = vpop.f32.mrb[0].mxu0
        %v347 = vadd.f32 %v195, %v346
        %v348 = vpop.f32.mrb[0].mxu0
        %349 = vmatprep.mubr.f32.mxu0 0.0
        %350 = vmatmul.mubr.f32.gmra.mrb[0].mxu0 %v222
        %v351 = vpop.f32.mrb[0].mxu0
        %v352 = vadd.f32 %v195, %v351
        %v353 = vpop.f32.mrb[0].mxu0
        %354 = vmatprep.mubr.f32.mxu0 0.0
        %355 = vmatmul.mubr.f32.gmra.mrb[0].mxu0 %v225
        %v356 = vpop.f32.mrb[0].mxu0
        %v357 = vadd.f32 %v195, %v356
        %v358 = vpop.f32.mrb[0].mxu0
        %359 = vmatprep.mubr.f32.mxu0 0.0
        %360 = vmatmul.mubr.f32.gmra.mrb[0].mxu0 %v228
        %v361 = vpop.f32.mrb[0].mxu0
        %v362 = vadd.f32 %v195, %v361
        %v363 = vpop.f32.mrb[0].mxu0
        %364 = vmatprep.mubr.f32.mxu0 0.0
        %365 = vmatmul.mubr.f32.gmra.mrb[0].mxu0 %v231
        %v366 = vpop.f32.mrb[0].mxu0
        %v367 = vadd.f32 %v195, %v366
        %v368 = vpop.f32.mrb[0].mxu0
        %369 = vmatprep.mubr.f32.mxu0 0.0
        %370 = vmatmul.mubr.f32.gmra.mrb[0].mxu0 %v234
        %v371 = vpop.f32.mrb[0].mxu0
        %v372 = vadd.f32 %v195, %v371
        %v373 = vpop.f32.mrb[0].mxu0
        %374 = vmatprep.mubr.f32.mxu0 0.0
        %375 = vmatmul.mubr.f32.gmra.mrb[0].mxu0 %v237
        %v376 = vpop.f32.mrb[0].mxu0
        %v377 = vadd.f32 %v195, %v376
        %v378 = vpop.f32.mrb[0].mxu0
        %379 = vmatprep.mubr.f32.mxu0 0.0
        %380 = vmatmul.mubr.f32.gmra.mrb[0].mxu0 %v240
        %v381 = vpop.f32.mrb[0].mxu0
        %v382 = vadd.f32 %v195, %v381
        %v383 = vpop.f32.mrb[0].mxu0
        %384 = vmatprep.mubr.f32.mxu0 0.0
        %385 = vmatmul.mubr.f32.gmra.mrb[0].mxu0 %v243
        %v386 = vpop.f32.mrb[0].mxu0
        %v387 = vadd.f32 %v195, %v386
        %v388 = vpop.f32.mrb[0].mxu0
        %389 = vdwg.mxu0
        %v390 = vlaneseq
        %v391 = vshrl.u32 %v390, 7
        %v392 = vadd.s32 %v391, 8
        %v393 = vadd.s32 %v391, 16
        %v394 = vadd.s32 %v391, 24
        %v395 = vadd.s32 %v391, 32
        %v396 = vadd.s32 %v391, 40
        %v397 = vadd.s32 %v391, 48
        %v398 = vadd.s32 %v391, 56
        %v399 = vadd.s32 %v391, 64
        %v400 = vadd.s32 %v391, 72
        %v401 = vadd.s32 %v391, 80
        %v402 = vadd.s32 %v391, 88
        %v403 = vadd.s32 %v391, 96
        %v404 = vadd.s32 %v391, 104
        %v405 = vadd.s32 %v391, 112
        %v406 = vadd.s32 %v391, 120
        %s407 = smul.u32 %s17, 128
        %v408 = vstv %s407
        %v409 = vadd.s32 %v391, %v408
        %v410 = vadd.s32 %v392, %v408
        %v411 = vadd.s32 %v393, %v408
        %v412 = vadd.s32 %v394, %v408
        %v413 = vadd.s32 %v395, %v408
        %v414 = vadd.s32 %v396, %v408
        %v415 = vadd.s32 %v397, %v408
        %v416 = vadd.s32 %v398, %v408
        %v417 = vadd.s32 %v399, %v408
        %v418 = vadd.s32 %v400, %v408
        %v419 = vadd.s32 %v401, %v408
        %v420 = vadd.s32 %v402, %v408
        %v421 = vadd.s32 %v403, %v408
        %v422 = vadd.s32 %v404, %v408
        %v423 = vadd.s32 %v405, %v408
        %v424 = vadd.s32 %v406, %v408
        %vm425 = vcmp.lt.s32.totalorder %v409, 512
        %vm426 = vcmp.lt.s32.totalorder %v410, 512
        %vm427 = vcmp.lt.s32.totalorder %v411, 512
        %vm428 = vcmp.lt.s32.totalorder %v412, 512
        %vm429 = vcmp.lt.s32.totalorder %v413, 512
        %vm430 = vcmp.lt.s32.totalorder %v414, 512
        %vm431 = vcmp.lt.s32.totalorder %v415, 512
        %vm432 = vcmp.lt.s32.totalorder %v416, 512
        %vm433 = vcmp.lt.s32.totalorder %v417, 512
        %vm434 = vcmp.lt.s32.totalorder %v418, 512
        %vm435 = vcmp.lt.s32.totalorder %v419, 512
        %vm436 = vcmp.lt.s32.totalorder %v420, 512
        %vm437 = vcmp.lt.s32.totalorder %v421, 512
        %vm438 = vcmp.lt.s32.totalorder %v422, 512
        %vm439 = vcmp.lt.s32.totalorder %v423, 512
        %vm440 = vcmp.lt.s32.totalorder %v424, 512
        %v441 = vsel %vm425, 1, 0
        %v442 = vsel %vm426, 1, 0
        %v443 = vsel %vm427, 1, 0
        %v444 = vsel %vm428, 1, 0
        %v445 = vsel %vm429, 1, 0
        %v446 = vsel %vm430, 1, 0
        %v447 = vsel %vm431, 1, 0
        %v448 = vsel %vm432, 1, 0
        %v449 = vsel %vm433, 1, 0
        %v450 = vsel %vm434, 1, 0
        %v451 = vsel %vm435, 1, 0
        %v452 = vsel %vm436, 1, 0
        %v453 = vsel %vm437, 1, 0
        %v454 = vsel %vm438, 1, 0
        %v455 = vsel %vm439, 1, 0
        %v456 = vsel %vm440, 1, 0
        %vm457 = vcmp.eq.s32.totalorder %v441, 1
        %vm458 = vcmp.eq.s32.totalorder %v442, 1
        %vm459 = vcmp.eq.s32.totalorder %v443, 1
        %vm460 = vcmp.eq.s32.totalorder %v444, 1
        %vm461 = vcmp.eq.s32.totalorder %v445, 1
        %vm462 = vcmp.eq.s32.totalorder %v446, 1
        %vm463 = vcmp.eq.s32.totalorder %v447, 1
        %vm464 = vcmp.eq.s32.totalorder %v448, 1
        %vm465 = vcmp.eq.s32.totalorder %v449, 1
        %vm466 = vcmp.eq.s32.totalorder %v450, 1
        %vm467 = vcmp.eq.s32.totalorder %v451, 1
        %vm468 = vcmp.eq.s32.totalorder %v452, 1
        %vm469 = vcmp.eq.s32.totalorder %v453, 1
        %vm470 = vcmp.eq.s32.totalorder %v454, 1
        %vm471 = vcmp.eq.s32.totalorder %v455, 1
        %vm472 = vcmp.eq.s32.totalorder %v456, 1
        %v473 = vsel %vm457, %v312, 0.0
        %v474 = vsel %vm458, %v317, 0.0
        %v475 = vsel %vm459, %v322, 0.0
        %v476 = vsel %vm460, %v327, 0.0
        %v477 = vsel %vm461, %v332, 0.0
        %v478 = vsel %vm462, %v337, 0.0
        %v479 = vsel %vm463, %v342, 0.0
        %v480 = vsel %vm464, %v347, 0.0
        %v481 = vsel %vm465, %v352, 0.0
        %v482 = vsel %vm466, %v357, 0.0
        %v483 = vsel %vm467, %v362, 0.0
        %v484 = vsel %vm468, %v367, 0.0
        %v485 = vsel %vm469, %v372, 0.0
        %v486 = vsel %vm470, %v377, 0.0
        %v487 = vsel %vm471, %v382, 0.0
        %v488 = vsel %vm472, %v387, 0.0
        %vm489 = vcmask 392192
        %v490 = vsel %vm489, %v473, 0.0
        %v491 = vsel %vm489, %v474, 0.0
        %v492 = vadd.f32 %v490, %v491
        %v493 = vsel %vm489, %v475, 0.0
        %v494 = vadd.f32 %v492, %v493
        %v495 = vsel %vm489, %v476, 0.0
        %v496 = vadd.f32 %v494, %v495
        %v497 = vsel %vm489, %v477, 0.0
        %v498 = vadd.f32 %v496, %v497
        %v499 = vsel %vm489, %v478, 0.0
        %v500 = vadd.f32 %v498, %v499
        %v501 = vsel %vm489, %v479, 0.0
        %v502 = vadd.f32 %v500, %v501
        %v503 = vsel %vm489, %v480, 0.0
        %v504 = vadd.f32 %v502, %v503
        %v505 = vsel %vm489, %v481, 0.0
        %v506 = vadd.f32 %v504, %v505
        %v507 = vsel %vm489, %v482, 0.0
        %v508 = vadd.f32 %v506, %v507
        %v509 = vsel %vm489, %v483, 0.0
        %v510 = vadd.f32 %v508, %v509
        %v511 = vsel %vm489, %v484, 0.0
        %v512 = vadd.f32 %v510, %v511
        %v513 = vsel %vm489, %v485, 0.0
        %v514 = vadd.f32 %v512, %v513
        %v515 = vsel %vm489, %v486, 0.0
        %v516 = vadd.f32 %v514, %v515
        %v517 = vsel %vm489, %v487, 0.0
        %v518 = vadd.f32 %v516, %v517
        %v519 = vsel %vm489, %v488, 0.0
        %v520 = vadd.f32 %v518, %v519
        %v521 = vrot.slane %v520, 4
        %v522 = vadd.f32 %v520, %v521
        %v523 = vrot.slane %v522, 2
        %v524 = vadd.f32 %v522, %v523
        %v525 = vrot.slane %v524, 1
        %v526 = vadd.f32 %v524, %v525
        %v527 = vmul.f32 %v473, %v473
        %v528 = vmul.f32 %v474, %v474
        %v529 = vmul.f32 %v475, %v475
        %v530 = vmul.f32 %v476, %v476
        %v531 = vmul.f32 %v477, %v477
        %v532 = vmul.f32 %v478, %v478
        %v533 = vmul.f32 %v479, %v479
        %v534 = vmul.f32 %v480, %v480
        %v535 = vmul.f32 %v481, %v481
        %v536 = vmul.f32 %v482, %v482
        %v537 = vmul.f32 %v483, %v483
        %v538 = vmul.f32 %v484, %v484
        %v539 = vmul.f32 %v485, %v485
        %v540 = vmul.f32 %v486, %v486
        %v541 = vmul.f32 %v487, %v487
        %v542 = vmul.f32 %v488, %v488
        %v543 = vsel %vm489, %v527, 0.0
        %v544 = vsel %vm489, %v528, 0.0
        %v545 = vadd.f32 %v543, %v544
        %v546 = vsel %vm489, %v529, 0.0
        %v547 = vadd.f32 %v545, %v546
        %v548 = vsel %vm489, %v530, 0.0
        %v549 = vadd.f32 %v547, %v548
        %v550 = vsel %vm489, %v531, 0.0
        %v551 = vadd.f32 %v549, %v550
        %v552 = vsel %vm489, %v532, 0.0
        %v553 = vadd.f32 %v551, %v552
        %v554 = vsel %vm489, %v533, 0.0
        %v555 = vadd.f32 %v553, %v554
        %v556 = vsel %vm489, %v534, 0.0
        %v557 = vadd.f32 %v555, %v556
        %v558 = vsel %vm489, %v535, 0.0
        %v559 = vadd.f32 %v557, %v558
        %v560 = vsel %vm489, %v536, 0.0
        %v561 = vadd.f32 %v559, %v560
        %v562 = vsel %vm489, %v537, 0.0
        %v563 = vadd.f32 %v561, %v562
        %v564 = vsel %vm489, %v538, 0.0
        %v565 = vadd.f32 %v563, %v564
        %v566 = vsel %vm489, %v539, 0.0
        %v567 = vadd.f32 %v565, %v566
        %v568 = vsel %vm489, %v540, 0.0
        %v569 = vadd.f32 %v567, %v568
        %v570 = vsel %vm489, %v541, 0.0
        %v571 = vadd.f32 %v569, %v570
        %v572 = vsel %vm489, %v542, 0.0
        %v573 = vadd.f32 %v571, %v572
        %v574 = vrot.slane %v573, 4
        %v575 = vadd.f32 %v573, %v574
        %v576 = vrot.slane %v575, 2
        %v577 = vadd.f32 %v575, %v576
        %v578 = vrot.slane %v577, 1
        %v579 = vadd.f32 %v577, %v578
        %vm580 = vcmask 1040384
        %v581 = vsel %vm580, %v526, %v579
        %vm582 = vcmask 386048
        %583 = vst.msk [vmem:[%s164] sm:$0x3] %vm582, %v581
        %s584 = sand.u32 %s93, 1
        %s585 = scalar_lea.sflag [#allocation3], %s584
        %s586 = sand.u32 %s93, 1
        %s587 = smul.addr %s586, 2
        %s588 = scalar_lea.vmem [#allocation2], %s587
        // Predicated region
        $region33: #{tpu_custom_call.1} parent=31 // pred_check
          %p589 = pneg %p103
        $region34: #{tpu_custom_call.1} parent=31 // pred_check_branch
          %591 = sbr.rel (%p589) target = $region36
        $region35: #{tpu_custom_call.1} parent=31 // pred_region
          %s593 = ssub.s32 32, 32
          %594 = vsyncadd %s585, %s593
          %s595 = smul.addr %s17, 32
          %s596 = scalar_lea.hbm %s3, %s595
          %s598 = sshll.u32 %s588, 4
          %s599 = int_to_ptr.vmem [resolvable:$true] %s598
          %601 = dma.vmem_to_hbm [thread:$0]  %s599, 32, %s596, %s585
        $region36: #{tpu_custom_call.1} parent=31 // pred_fallthru
          _
      $region32: #{tpu_custom_call.1} parent=5 // pred_fallthru
        _
      %p602 = scmp.le.s32.totalorder 2, %s12
      // Predicated region
      $region37: #{tpu_custom_call.1} parent=5 // pred_check
        %p603 = pneg %p602
      $region38: #{tpu_custom_call.1} parent=5 // pred_check_branch
        %605 = sbr.rel (%p603) target = $region40
      $region39: #{tpu_custom_call.1} parent=5 // pred_region
        %s606 = ssub.s32 %s12, 2
        // Predicated region
        $region41: #{tpu_custom_call.1} parent=39 // pred_check
          %p607 = pneg %p109
        $region42: #{tpu_custom_call.1} parent=39 // pred_check_branch
          %609 = sbr.rel (%p607) target = $region44
        $region43: #{tpu_custom_call.1} parent=39 // pred_region
          %s610 = sand.u32 %s94, 1
          %s611 = scalar_lea.sflag [#allocation3], %s610
          %s612 = sand.u32 %s94, 1
          %s613 = smul.addr %s612, 2
          %s614 = scalar_lea.vmem [#allocation2], %s613
          %615 = dma.done %s611, 32
        $region44: #{tpu_custom_call.1} parent=39 // pred_fallthru
          _
      $region40: #{tpu_custom_call.1} parent=5 // pred_fallthru
        _
    $region6: #{tpu_custom_call.1} parent=1 // loop_footer
      %s16 = sadd.s32 1, %s12
    $region7: #{tpu_custom_call.1} parent=1 // loop_footer_branch
      %11 = sbr.rel target = $region3
    $region8: #{tpu_custom_call.1} parent=1 // loop_exit
      _
    %616 = vsyncpa [#allocation3], 1
    %s617 = scalar_lea.sflag [#allocation3], 1
    %618 = vsyncpa %s617, 1

</llo_original>
